<compile_context>
chip_gen: v5e
topology: v5e:2x2
jax: 0.10.0
libtpu: 0.0.40
codegen_flags: <defaults>
</compile_context>

<pallas_src>
import functools

import jax
import jax.numpy as jnp
from jax.experimental import pallas as pl
from jax.experimental.pallas import tpu as pltpu

_LANE = 128      # vreg lane width (last dim)
_SUBLANE = 8     # vreg sublane width (second-to-last dim)
_TB_CAP = 256    # max batch rows per grid step (matches v6e/v7x 256-wide MXU)


def _round_up(n, m):
    return ((n + m - 1) // m) * m


def _cdiv(a, b):
    return -(-a // b)


# ----------------------------------------------------------------------------
# Fused kernel: whole MLP in one body.  Layer count / dims are static, so a
# Python loop unrolls into a chain of MXU matmuls; activations stay on-chip.
# ----------------------------------------------------------------------------
def _mlp_kernel(*refs, n_layers, out_dims_p):
    x_ref = refs[0]                      # (tb, d0_used)        f32 or bf16
    b_ref = refs[1]                      # (n_layers, Dmax_pad) f32
    w_refs = refs[2:2 + n_layers]        # (Kp_i, Np_i)         bf16
    o_ref = refs[2 + n_layers]           # (tb, d_last_p)       f32

    b_all = b_ref[...]                           # tiny; load once per step
    h = x_ref[...].astype(jnp.bfloat16)          # no-op if already bf16
    for i in range(n_layers):
        dp = out_dims_p[i]
        acc = jnp.dot(h, w_refs[i][...], preferred_element_type=jnp.float32)
        acc = acc + b_all[i:i + 1, :dp]          # f32 epilogue (broadcast over rows)
        if i != n_layers - 1:
            h = jnp.maximum(acc, 0.0).astype(jnp.bfloat16)
        else:
            o_ref[...] = acc.astype(o_ref.dtype)


# ----------------------------------------------------------------------------
# Parameter init (matches nn.Linear shapes, stored as (in, out)) and packing.
# ----------------------------------------------------------------------------
def init_mlp_params(key, dimension_list, dtype=jnp.float32):
    params = []
    for i in range(1, len(dimension_list)):
        d_in, d_out = dimension_list[i - 1], dimension_list[i]
        key, kw, kb = jax.random.split(key, 3)
        bound = 1.0 / (d_in ** 0.5)
        w = jax.random.uniform(kw, (d_in, d_out), dtype, -bound, bound)
        b = jax.random.uniform(kb, (1, d_out), dtype, -bound, bound)
        params.append((w, b))
    return params


def _pack_params_for_tpu(params, d0_used):
    """bf16 weights, out dims padded to 128; first layer K dim = d0_used (maybe unpadded).
    Biases concatenated into a single zero-padded (n_layers, Dmax_pad) f32 array."""
    weights, out_dims_p = [], []
    for li, (w, _) in enumerate(params):
        d_in, d_out = w.shape
        k_p = d0_used if li == 0 else _round_up(d_in, _LANE)
        n_p = _round_up(d_out, _LANE)
        w_p = jnp.zeros((k_p, n_p), jnp.bfloat16).at[:d_in, :d_out].set(
            w.astype(jnp.bfloat16))
        weights.append(w_p)
        out_dims_p.append(n_p)
    dmax_p = max(out_dims_p)
    b_all = jnp.zeros((len(params), dmax_p), jnp.float32)
    for li, (_, b) in enumerate(params):
        b_all = b_all.at[li, :b.shape[1]].set(b[0].astype(jnp.float32))
    return weights, b_all, out_dims_p


# ----------------------------------------------------------------------------
# Wrapper: (maybe) pads, builds the single pallas_call, slices padding off.
# ----------------------------------------------------------------------------
def mlp_forward(x, params):
    """x: (B, D_in) f32; params: list of (W (d_in, d_out) f32, b (1, d_out) f32)."""
    n_layers = len(params)
    B, d_in_real = x.shape
    d_out_real = params[-1][0].shape[1]

    # Batch tiling: cap at 256 rows; force >= 2 grid steps when B allows so the
    # "parallel" batch axis actually splits across v7x's two TensorCores.
    n_steps = _cdiv(B, _TB_CAP)
    if n_steps == 1 and B > _SUBLANE:
        n_steps = 2
    tb = _round_up(_cdiv(B, n_steps), _SUBLANE)
    B_p = tb * n_steps

    # First-layer K dim: leave unpadded when a full-extent block is legal.
    if d_in_real % _LANE == 0 or (d_in_real < _LANE and d_in_real % _SUBLANE == 0):
        d0_used = d_in_real
    else:
        d0_used = _round_up(d_in_real, _LANE)

    weights, b_all, out_dims_p = _pack_params_for_tpu(params, d0_used)
    dmax_p = max(out_dims_p)
    d_last_p = out_dims_p[-1]

    # Input: only materialize a pad pass when needed; fuse the bf16 cast into it.
    if B_p != B or d0_used != d_in_real:
        x_in = jnp.zeros((B_p, d0_used), jnp.bfloat16).at[:B, :d_in_real].set(
            x.astype(jnp.bfloat16))
    else:
        x_in = x  # pass f32 through untouched; cast to bf16 in-kernel

    # VMEM budgeting (weights/biases single-buffered, input/output double-buffered).
    param_bytes = sum(int(w.size) * 2 for w in weights) + int(b_all.size) * 4
    act_bytes = (2 * tb * d0_used * x_in.dtype.itemsize      # input double buffer
                 + 2 * tb * d_last_p * 4                     # output double buffer
                 + 6 * tb * dmax_p * 4)                      # acc/h working set + slack
    vmem_needed = param_bytes + act_bytes + (2 << 20)
    try:
        vmem_phys = int(pltpu.get_tpu_info().vmem_capacity_bytes)
    except Exception:
        vmem_phys = 64 << 20  # v7x per-TC physical VMEM; safe lower bound everywhere
    if vmem_needed > vmem_phys:
        raise ValueError(
            f"MLP parameters + working set (~{vmem_needed / 2**20:.1f} MiB) exceed the "
            f"{vmem_phys / 2**20:.0f} MiB VMEM budget; tile wide layers over the "
            "output-feature dim or keep them in HBM (see TODO in header).")
    vmem_limit = int(min(max(vmem_needed, 32 << 20), vmem_phys))

    in_specs = [
        pl.BlockSpec((tb, d0_used), lambda i: (i, 0)),
        pl.BlockSpec(b_all.shape, lambda i: (0, 0), pipeline_mode=pl.Buffered(1)),
    ]
    for w_p in weights:
        in_specs.append(pl.BlockSpec(w_p.shape, lambda i: (0, 0),
                                     pipeline_mode=pl.Buffered(1)))

    out = pl.pallas_call(
        functools.partial(_mlp_kernel, n_layers=n_layers,
                          out_dims_p=tuple(out_dims_p)),
        out_shape=jax.ShapeDtypeStruct((B_p, d_last_p), x.dtype),
        grid=(B_p // tb,),
        in_specs=in_specs,
        out_specs=pl.BlockSpec((tb, d_last_p), lambda i: (i, 0)),
        compiler_params=pltpu.CompilerParams(
            dimension_semantics=("parallel",),   # batch axis -> megacore on v7x
            vmem_limit_bytes=vmem_limit),
    )(x_in, b_all, *weights)

    return out[:B, :d_out_real]


if __name__ == "__main__":
    # Small shapes consistent with the module, e.g. dimension_list=[32, 64, 64, 16]
    dimension_list = [32, 64, 64, 16]
    batch = 8

    key = jax.random.PRNGKey(0)
    key_x, key_p = jax.random.split(key)
    x = jax.random.normal(key_x, (batch, dimension_list[0]), jnp.float32)
    params = init_mlp_params(key_p, dimension_list)

    out = mlp_forward(x, params)
    out = jax.block_until_ready(out)

    # Reference in plain JAX using the same bf16-operand / f32-accumulate math
    # (eval-mode dropout = identity).
    ref = x
    for i, (w, b) in enumerate(params):
        ref = jnp.dot(ref.astype(jnp.bfloat16), w.astype(jnp.bfloat16),
                      preferred_element_type=jnp.float32) + b
        if i != len(params) - 1:
            ref = jnp.maximum(ref, 0.0)

    assert out.shape == (batch, dimension_list[-1])
    assert jnp.allclose(out, ref, atol=2e-2, rtol=2e-2), (
        f"max abs err {jnp.max(jnp.abs(out - ref))}")

    print("KERNEL_OK")
</pallas_src>

<mosaic_0001>
module attributes {stable_mosaic.version = 11 : i64} {
  func.func @_mlp_kernel(%arg0: i32, %arg1: memref<8x32xf32, #tpu.memory_space<vmem>>, %arg2: memref<3x128xf32, #tpu.memory_space<vmem>>, %arg3: memref<32x128xbf16, #tpu.memory_space<vmem>>, %arg4: memref<128x128xbf16, #tpu.memory_space<vmem>>, %arg5: memref<128x128xbf16, #tpu.memory_space<vmem>>, %arg6: memref<8x128xf32, #tpu.memory_space<vmem>>) attributes {dimension_semantics = [#tpu.dimension_semantics<parallel>], iteration_bounds = array<i64: 1>, scalar_prefetch = 0 : i64, scratch_operands = 0 : i64, tpu.core_type = #tpu.core_type<tc>, window_params = [{transform_indices = @transform_0, window_bounds = array<i64: 8, 32>}, {pipeline_mode = #tpu.pipeline_mode<synchronous>, transform_indices = @transform_1, window_bounds = array<i64: 3, 128>}, {pipeline_mode = #tpu.pipeline_mode<synchronous>, transform_indices = @transform_2, window_bounds = array<i64: 32, 128>}, {pipeline_mode = #tpu.pipeline_mode<synchronous>, transform_indices = @transform_3, window_bounds = array<i64: 128, 128>}, {pipeline_mode = #tpu.pipeline_mode<synchronous>, transform_indices = @transform_4, window_bounds = array<i64: 128, 128>}, {transform_indices = @transform_5, window_bounds = array<i64: 8, 128>}]} {
    %c0 = arith.constant 0 : index
    %c0_0 = arith.constant 0 : index
    %0 = vector.load %arg2[%c0, %c0_0] : memref<3x128xf32, #tpu.memory_space<vmem>>, vector<3x128xf32>
    %c0_1 = arith.constant 0 : index
    %c0_2 = arith.constant 0 : index
    %1 = vector.load %arg1[%c0_1, %c0_2] : memref<8x32xf32, #tpu.memory_space<vmem>>, vector<8x32xf32>
    %2 = arith.truncf %1 : vector<8x32xf32> to vector<8x32xbf16>
    %c0_3 = arith.constant 0 : index
    %c0_4 = arith.constant 0 : index
    %3 = vector.load %arg3[%c0_3, %c0_4] : memref<32x128xbf16, #tpu.memory_space<vmem>>, vector<32x128xbf16>
    %cst = arith.constant dense<0.000000e+00> : vector<8x128xf32>
    %4 = tpu.matmul %2, %3, %cst {dimension_numbers = #tpu.dot_dimension_numbers<[1], [0], [0], [1], [0, 0, 1, 1], [], []>} : vector<8x32xbf16>, vector<32x128xbf16>, vector<8x128xf32> -> vector<8x128xf32>
    %5 = vector.extract_strided_slice %0 {offsets = [0, 0], sizes = [1, 128], strides = [1, 1]} : vector<3x128xf32> to vector<1x128xf32>
    %6 = vector.broadcast %5 : vector<1x128xf32> to vector<8x128xf32>
    %7 = arith.addf %4, %6 : vector<8x128xf32>
    %cst_5 = arith.constant 0.000000e+00 : f32
    %8 = vector.broadcast %cst_5 : f32 to vector<8x128xf32>
    %9 = arith.maximumf %7, %8 : vector<8x128xf32>
    %10 = arith.truncf %9 : vector<8x128xf32> to vector<8x128xbf16>
    %c0_6 = arith.constant 0 : index
    %c0_7 = arith.constant 0 : index
    %11 = vector.load %arg4[%c0_6, %c0_7] : memref<128x128xbf16, #tpu.memory_space<vmem>>, vector<128x128xbf16>
    %cst_8 = arith.constant dense<0.000000e+00> : vector<8x128xf32>
    %12 = tpu.matmul %10, %11, %cst_8 {dimension_numbers = #tpu.dot_dimension_numbers<[1], [0], [0], [1], [0, 0, 1, 1], [], []>} : vector<8x128xbf16>, vector<128x128xbf16>, vector<8x128xf32> -> vector<8x128xf32>
    %13 = vector.extract_strided_slice %0 {offsets = [1, 0], sizes = [1, 128], strides = [1, 1]} : vector<3x128xf32> to vector<1x128xf32>
    %14 = vector.broadcast %13 : vector<1x128xf32> to vector<8x128xf32>
    %15 = arith.addf %12, %14 : vector<8x128xf32>
    %cst_9 = arith.constant 0.000000e+00 : f32
    %16 = vector.broadcast %cst_9 : f32 to vector<8x128xf32>
    %17 = arith.maximumf %15, %16 : vector<8x128xf32>
    %18 = arith.truncf %17 : vector<8x128xf32> to vector<8x128xbf16>
    %c0_10 = arith.constant 0 : index
    %c0_11 = arith.constant 0 : index
    %19 = vector.load %arg5[%c0_10, %c0_11] : memref<128x128xbf16, #tpu.memory_space<vmem>>, vector<128x128xbf16>
    %cst_12 = arith.constant dense<0.000000e+00> : vector<8x128xf32>
    %20 = tpu.matmul %18, %19, %cst_12 {dimension_numbers = #tpu.dot_dimension_numbers<[1], [0], [0], [1], [0, 0, 1, 1], [], []>} : vector<8x128xbf16>, vector<128x128xbf16>, vector<8x128xf32> -> vector<8x128xf32>
    %21 = vector.extract_strided_slice %0 {offsets = [2, 0], sizes = [1, 128], strides = [1, 1]} : vector<3x128xf32> to vector<1x128xf32>
    %22 = vector.broadcast %21 : vector<1x128xf32> to vector<8x128xf32>
    %23 = arith.addf %20, %22 : vector<8x128xf32>
    %c0_13 = arith.constant 0 : index
    %c0_14 = arith.constant 0 : index
    %24 = vector.load %arg6[%c0_13, %c0_14] : memref<8x128xf32, #tpu.memory_space<vmem>>, vector<8x128xf32>
    tpu.vector_store %arg6[%c0_13, %c0_14], %23 {strides = array<i32>} : memref<8x128xf32, #tpu.memory_space<vmem>>, vector<8x128xf32>,
    return
  }
  func.func @transform_0(%arg0: i32) -> (i32, i32) {
    %c0_i32 = arith.constant 0 : i32
    %c0_i32_0 = arith.constant 0 : i32
    return %arg0, %c0_i32 : i32, i32
  }
  func.func @transform_1(%arg0: i32) -> (i32, i32) {
    %c0_i32 = arith.constant 0 : i32
    %c0_i32_0 = arith.constant 0 : i32
    %c0_i32_1 = arith.constant 0 : i32
    return %c0_i32, %c0_i32_0 : i32, i32
  }
  func.func @transform_2(%arg0: i32) -> (i32, i32) {
    %c0_i32 = arith.constant 0 : i32
    %c0_i32_0 = arith.constant 0 : i32
    %c0_i32_1 = arith.constant 0 : i32
    return %c0_i32, %c0_i32_0 : i32, i32
  }
  func.func @transform_3(%arg0: i32) -> (i32, i32) {
    %c0_i32 = arith.constant 0 : i32
    %c0_i32_0 = arith.constant 0 : i32
    %c0_i32_1 = arith.constant 0 : i32
    return %c0_i32, %c0_i32_0 : i32, i32
  }
  func.func @transform_4(%arg0: i32) -> (i32, i32) {
    %c0_i32 = arith.constant 0 : i32
    %c0_i32_0 = arith.constant 0 : i32
    %c0_i32_1 = arith.constant 0 : i32
    return %c0_i32, %c0_i32_0 : i32, i32
  }
  func.func @transform_5(%arg0: i32) -> (i32, i32) {
    %c0_i32 = arith.constant 0 : i32
    %c0_i32_0 = arith.constant 0 : i32
    return %arg0, %c0_i32 : i32, i32
  }
}

</mosaic_0001>

<llo_original>
// kernel: tpu_custom_call.1
$region0: #{tpu_custom_call.1}
  #allocation0 [shape = 'u32[]', space=smem, size = 0x4, offset = 0x4, fixed_abs, tag = 'smem constant byte address 0x4 - core index']
  #allocation1 [shape = 'u32[72,128]{1,0:T(1,128)}', space=vmem, size = 0x9000, scoped, tag = 'internal scratch']
  %s0 = inlined_call_operand.hbm [shape: f32[8,32], index: 0, kind: input, shape index: {}]
  %s1 = inlined_call_operand.hbm [shape: f32[3,128], index: 1, kind: input, shape index: {}]
  %s2 = inlined_call_operand.hbm [shape: bf16[32,128], index: 2, kind: input, shape index: {}]
  %s3 = inlined_call_operand.hbm [shape: bf16[128,128], index: 3, kind: input, shape index: {}]
  %s4 = inlined_call_operand.hbm [shape: bf16[128,128], index: 4, kind: input, shape index: {}]
  %s5 = inlined_call_operand.hbm [shape: f32[8,128], index: 5, kind: output, shape index: {}]
  %s6 = sld [smem:[#allocation0]]
  $region50: #{tpu_custom_call.1} parent=0
    _
  %s8 = ssub.s32 1, %s6
  %s9 = scalar_select 0, %s8, %s6
  $region1: #{tpu_custom_call.1} parent=0
    #allocation2 [shape = 'u8[4096]{0}', space=vmem, size = 0x1000, scoped, tag = 'input window, operand 0, single buffered']
    #allocation3 [shape = 's32[1]{0}', space=sflag, size = 0x4, scoped, tag = 'scoped memory for tpu_custom_call.1']
    #allocation4 [shape = 's32[1]{0}', space=sflag, size = 0x4, scoped, tag = 'scoped memory for tpu_custom_call.1']
    #allocation5 [shape = 'u8[2048]{0}', space=vmem, size = 0x800, scoped, tag = 'input window, operand 1, single buffered']
    #allocation6 [shape = 's32[1]{0}', space=sflag, size = 0x4, scoped, tag = 'scoped memory for tpu_custom_call.1']
    #allocation7 [shape = 'u8[8192]{0}', space=vmem, size = 0x2000, scoped, tag = 'input window, operand 2, single buffered']
    #allocation8 [shape = 'u8[32768]{0}', space=vmem, size = 0x8000, scoped, tag = 'input window, operand 3, single buffered']
    #allocation9 [shape = 's32[1]{0}', space=sflag, size = 0x4, scoped, tag = 'scoped memory for tpu_custom_call.1']
    #allocation10 [shape = 'u8[32768]{0}', space=vmem, size = 0x8000, scoped, tag = 'input window, operand 4, single buffered']
    #allocation11 [shape = 'u8[4096]{0}', space=vmem, size = 0x1000, scoped, tag = 'output window, operand 0, single buffered']
    %10 = vsyncpa [#allocation3], 0
    %11 = vsyncpa [#allocation6], 0
    %12 = vsyncpa [#allocation9], 0
    %13 = vsyncpa [#allocation4], 0
    // Predicated region
    $region2: #{tpu_custom_call.1} parent=1 // pred_check
      _
    $region3: #{tpu_custom_call.1} parent=1 // pred_check_branch
      %15 = sbr.rel (0) target = $region5
    $region4: #{tpu_custom_call.1} parent=1 // pred_region
      %17 = vsyncadd [#allocation3], 0
      %s19 = sshll.u32 %s0, 4
      %s20 = int_to_ptr.hbm [resolvable:$true] %s19
      %s21 = sshll.u32 [#allocation2], 4
      %s22 = int_to_ptr.vmem [resolvable:$true] %s21
      %24 = dma.hbm_to_vmem [thread:$0]  %s20, 128, %s22, [#allocation3]
    $region5: #{tpu_custom_call.1} parent=1 // pred_fallthru
      _
    // Predicated region
    $region6: #{tpu_custom_call.1} parent=1 // pred_check
      _
    $region7: #{tpu_custom_call.1} parent=1 // pred_check_branch
      %26 = sbr.rel (0) target = $region9
    $region8: #{tpu_custom_call.1} parent=1 // pred_region
      %28 = vsyncadd [#allocation6], 0
      %s30 = sshll.u32 %s1, 4
      %s31 = int_to_ptr.hbm [resolvable:$true] %s30
      %s32 = sshll.u32 [#allocation5], 4
      %s33 = int_to_ptr.vmem [resolvable:$true] %s32
      %35 = dma.hbm_to_vmem [thread:$0]  %s31, 64, %s33, [#allocation6]
    $region9: #{tpu_custom_call.1} parent=1 // pred_fallthru
      _
    // Predicated region
    $region10: #{tpu_custom_call.1} parent=1 // pred_check
      _
    $region11: #{tpu_custom_call.1} parent=1 // pred_check_branch
      %37 = sbr.rel (0) target = $region13
    $region12: #{tpu_custom_call.1} parent=1 // pred_region
      %39 = vsyncadd [#allocation6], 0
      %s40 = sshll.u32 %s2, 4
      %s41 = int_to_ptr.hbm [resolvable:$true] %s40
      %s42 = sshll.u32 [#allocation7], 4
      %s43 = int_to_ptr.vmem [resolvable:$true] %s42
      %48 = dma.hbm_to_vmem [thread:$0]  %s41, 256, %s43, [#allocation6], 64, 64, 4
    $region13: #{tpu_custom_call.1} parent=1 // pred_fallthru
      _
    // Predicated region
    $region14: #{tpu_custom_call.1} parent=1 // pred_check
      _
    $region15: #{tpu_custom_call.1} parent=1 // pred_check_branch
      %50 = sbr.rel (0) target = $region17
    $region16: #{tpu_custom_call.1} parent=1 // pred_region
      %52 = vsyncadd [#allocation9], 0
      %s53 = sshll.u32 %s3, 4
      %s54 = int_to_ptr.hbm [resolvable:$true] %s53
      %s55 = sshll.u32 [#allocation8], 4
      %s56 = int_to_ptr.vmem [resolvable:$true] %s55
      %61 = dma.hbm_to_vmem [thread:$0]  %s54, 1024, %s56, [#allocation9], 64, 64, 4
    $region17: #{tpu_custom_call.1} parent=1 // pred_fallthru
      _
    // Predicated region
    $region18: #{tpu_custom_call.1} parent=1 // pred_check
      _
    $region19: #{tpu_custom_call.1} parent=1 // pred_check_branch
      %63 = sbr.rel (0) target = $region21
    $region20: #{tpu_custom_call.1} parent=1 // pred_region
      %65 = vsyncadd [#allocation9], 0
      %s66 = sshll.u32 %s4, 4
      %s67 = int_to_ptr.hbm [resolvable:$true] %s66
      %s68 = sshll.u32 [#allocation10], 4
      %s69 = int_to_ptr.vmem [resolvable:$true] %s68
      %74 = dma.hbm_to_vmem [thread:$0]  %s67, 1024, %s69, [#allocation9], 64, 64, 4
    $region21: #{tpu_custom_call.1} parent=1 // pred_fallthru
      _
    // Predicated region
    $region22: #{tpu_custom_call.1} parent=1 // pred_check
      _
    $region23: #{tpu_custom_call.1} parent=1 // pred_check_branch
      %76 = sbr.rel (0) target = $region25
    $region24: #{tpu_custom_call.1} parent=1 // pred_region
      %78 = dma.done [#allocation3], 128
    $region25: #{tpu_custom_call.1} parent=1 // pred_fallthru
      _
    // Predicated region
    $region26: #{tpu_custom_call.1} parent=1 // pred_check
      _
    $region27: #{tpu_custom_call.1} parent=1 // pred_check_branch
      %80 = sbr.rel (0) target = $region29
    $region28: #{tpu_custom_call.1} parent=1 // pred_region
      %82 = dma.done [#allocation6], 64
    $region29: #{tpu_custom_call.1} parent=1 // pred_fallthru
      _
    // Predicated region
    $region30: #{tpu_custom_call.1} parent=1 // pred_check
      _
    $region31: #{tpu_custom_call.1} parent=1 // pred_check_branch
      %84 = sbr.rel (0) target = $region33
    $region32: #{tpu_custom_call.1} parent=1 // pred_region
      %86 = dma.done [#allocation6], 256
    $region33: #{tpu_custom_call.1} parent=1 // pred_fallthru
      _
    // Predicated region
    $region34: #{tpu_custom_call.1} parent=1 // pred_check
      _
    $region35: #{tpu_custom_call.1} parent=1 // pred_check_branch
      %88 = sbr.rel (0) target = $region37
    $region36: #{tpu_custom_call.1} parent=1 // pred_region
      %90 = dma.done [#allocation9], 1024
    $region37: #{tpu_custom_call.1} parent=1 // pred_fallthru
      _
    // Predicated region
    $region38: #{tpu_custom_call.1} parent=1 // pred_check
      _
    $region39: #{tpu_custom_call.1} parent=1 // pred_check_branch
      %92 = sbr.rel (0) target = $region41
    $region40: #{tpu_custom_call.1} parent=1 // pred_region
      %94 = dma.done [#allocation9], 1024
    $region41: #{tpu_custom_call.1} parent=1 // pred_fallthru
      _
    %v96 = vld [vmem:[#allocation5] sm:$0x7]
    %v97 = vld [vmem:[#allocation2] sm:$0xff]
    %v98 = vpack.c.bf16 %v97, %v97
    %v99 = vld [vmem:[#allocation7] sm:$0xf]
    %v100 = vld [vmem:[#allocation7 + $0x4] sm:$0xf]
    %v101 = vld [vmem:[#allocation7 + $0x8] sm:$0xf]
    %v102 = vld [vmem:[#allocation7 + $0xc] sm:$0xf]
    %v103 = vperm.slane %v96, 0
    %v108 = vunpack.c.l.b16 %v99
    %v109 = vunpack.c.l.b16 %v100
    %v110 = vunpack.c.l.b16 %v101
    %v111 = vunpack.c.l.b16 %v102
    %v112 = vpack.c.b16 %v109, %v108
    %v113 = vpack.c.b16 %v111, %v110
    %vm116 = vcmask 261120
    %v118 = vsel %vm116, %v98, 0
    %120 = vmatpush.bf16.msra.mxu0 0
    %121 = vmatpush.bf16.msra.mxu0 0
    %122 = vmatpush.bf16.msra.mxu0 0
    %123 = vmatpush.bf16.msra.mxu0 0
    %124 = vmatpush.bf16.msra.mxu0 0
    %125 = vmatpush.bf16.msra.mxu0 0
    %126 = vmatpush.bf16.msra.mxu0 %v113
    %127 = vmatpush.bf16.msra.mxu0 %v112
    %128 = vmatmul.bf16.gmra.mxu0 %v118
    %v129 = vpop.f32.mrf.mxu0
    %v130 = vadd.f32 %v103, %v129
    %v131 = vpop.f32.mrf.mxu0
    %132 = vdwg.mxu0
    %v133 = vmax.f32 %v130, 0.0
    %v134 = vpack.c.bf16 %v133, %v133
    %v135 = vld [vmem:[#allocation8] sm:$0xf]
    %v136 = vld [vmem:[#allocation8 + $0x4] sm:$0xf]
    %v137 = vld [vmem:[#allocation8 + $0x8] sm:$0xf]
    %v138 = vld [vmem:[#allocation8 + $0xc] sm:$0xf]
    %v139 = vld [vmem:[#allocation8 + $0x10] sm:$0xf]
    %v140 = vld [vmem:[#allocation8 + $0x14] sm:$0xf]
    %v141 = vld [vmem:[#allocation8 + $0x18] sm:$0xf]
    %v142 = vld [vmem:[#allocation8 + $0x1c] sm:$0xf]
    %v143 = vld [vmem:[#allocation8 + $0x20] sm:$0xf]
    %v144 = vld [vmem:[#allocation8 + $0x24] sm:$0xf]
    %v145 = vld [vmem:[#allocation8 + $0x28] sm:$0xf]
    %v146 = vld [vmem:[#allocation8 + $0x2c] sm:$0xf]
    %v147 = vld [vmem:[#allocation8 + $0x30] sm:$0xf]
    %v148 = vld [vmem:[#allocation8 + $0x34] sm:$0xf]
    %v149 = vld [vmem:[#allocation8 + $0x38] sm:$0xf]
    %v150 = vld [vmem:[#allocation8 + $0x3c] sm:$0xf]
    %v151 = vperm.slane %v96, 1
    %v168 = vunpack.c.l.b16 %v135
    %v169 = vunpack.c.l.b16 %v136
    %v170 = vunpack.c.l.b16 %v137
    %v171 = vunpack.c.l.b16 %v138
    %v172 = vunpack.c.l.b16 %v139
    %v173 = vunpack.c.l.b16 %v140
    %v174 = vunpack.c.l.b16 %v141
    %v175 = vunpack.c.l.b16 %v142
    %v176 = vunpack.c.l.b16 %v143
    %v177 = vunpack.c.l.b16 %v144
    %v178 = vunpack.c.l.b16 %v145
    %v179 = vunpack.c.l.b16 %v146
    %v180 = vunpack.c.l.b16 %v147
    %v181 = vunpack.c.l.b16 %v148
    %v182 = vunpack.c.l.b16 %v149
    %v183 = vunpack.c.l.b16 %v150
    %v184 = vpack.c.b16 %v169, %v168
    %v185 = vpack.c.b16 %v171, %v170
    %v186 = vpack.c.b16 %v173, %v172
    %v187 = vpack.c.b16 %v175, %v174
    %v188 = vpack.c.b16 %v177, %v176
    %v189 = vpack.c.b16 %v179, %v178
    %v190 = vpack.c.b16 %v181, %v180
    %v191 = vpack.c.b16 %v183, %v182
    %200 = vmatpush.bf16.msra.mxu0 %v191
    %201 = vmatpush.bf16.msra.mxu0 %v190
    %202 = vmatpush.bf16.msra.mxu0 %v189
    %203 = vmatpush.bf16.msra.mxu0 %v188
    %204 = vmatpush.bf16.msra.mxu0 %v187
    %205 = vmatpush.bf16.msra.mxu0 %v186
    %206 = vmatpush.bf16.msra.mxu0 %v185
    %207 = vmatpush.bf16.msra.mxu0 %v184
    %208 = vmatmul.bf16.gmra.mxu0 %v134
    %v209 = vpop.f32.mrf.mxu0
    %v210 = vadd.f32 %v151, %v209
    %v211 = vpop.f32.mrf.mxu0
    %212 = vdwg.mxu0
    %v213 = vmax.f32 %v210, 0.0
    %v214 = vpack.c.bf16 %v213, %v213
    %v215 = vld [vmem:[#allocation10] sm:$0xf]
    %v216 = vld [vmem:[#allocation10 + $0x4] sm:$0xf]
    %v217 = vld [vmem:[#allocation10 + $0x8] sm:$0xf]
    %v218 = vld [vmem:[#allocation10 + $0xc] sm:$0xf]
    %v219 = vld [vmem:[#allocation10 + $0x10] sm:$0xf]
    %v220 = vld [vmem:[#allocation10 + $0x14] sm:$0xf]
    %v221 = vld [vmem:[#allocation10 + $0x18] sm:$0xf]
    %v222 = vld [vmem:[#allocation10 + $0x1c] sm:$0xf]
    %v223 = vld [vmem:[#allocation10 + $0x20] sm:$0xf]
    %v224 = vld [vmem:[#allocation10 + $0x24] sm:$0xf]
    %v225 = vld [vmem:[#allocation10 + $0x28] sm:$0xf]
    %v226 = vld [vmem:[#allocation10 + $0x2c] sm:$0xf]
    %v227 = vld [vmem:[#allocation10 + $0x30] sm:$0xf]
    %v228 = vld [vmem:[#allocation10 + $0x34] sm:$0xf]
    %v229 = vld [vmem:[#allocation10 + $0x38] sm:$0xf]
    %v230 = vld [vmem:[#allocation10 + $0x3c] sm:$0xf]
    %v231 = vperm.slane %v96, 2
    %v248 = vunpack.c.l.b16 %v215
    %v249 = vunpack.c.l.b16 %v216
    %v250 = vunpack.c.l.b16 %v217
    %v251 = vunpack.c.l.b16 %v218
    %v252 = vunpack.c.l.b16 %v219
    %v253 = vunpack.c.l.b16 %v220
    %v254 = vunpack.c.l.b16 %v221
    %v255 = vunpack.c.l.b16 %v222
    %v256 = vunpack.c.l.b16 %v223
    %v257 = vunpack.c.l.b16 %v224
    %v258 = vunpack.c.l.b16 %v225
    %v259 = vunpack.c.l.b16 %v226
    %v260 = vunpack.c.l.b16 %v227
    %v261 = vunpack.c.l.b16 %v228
    %v262 = vunpack.c.l.b16 %v229
    %v263 = vunpack.c.l.b16 %v230
    %v264 = vpack.c.b16 %v249, %v248
    %v265 = vpack.c.b16 %v251, %v250
    %v266 = vpack.c.b16 %v253, %v252
    %v267 = vpack.c.b16 %v255, %v254
    %v268 = vpack.c.b16 %v257, %v256
    %v269 = vpack.c.b16 %v259, %v258
    %v270 = vpack.c.b16 %v261, %v260
    %v271 = vpack.c.b16 %v263, %v262
    %280 = vmatpush.bf16.msra.mxu0 %v271
    %281 = vmatpush.bf16.msra.mxu0 %v270
    %282 = vmatpush.bf16.msra.mxu0 %v269
    %283 = vmatpush.bf16.msra.mxu0 %v268
    %284 = vmatpush.bf16.msra.mxu0 %v267
    %285 = vmatpush.bf16.msra.mxu0 %v266
    %286 = vmatpush.bf16.msra.mxu0 %v265
    %287 = vmatpush.bf16.msra.mxu0 %v264
    %288 = vmatmul.bf16.gmra.mxu0 %v214
    %v289 = vpop.f32.mrf.mxu0
    %v290 = vadd.f32 %v231, %v289
    %v291 = vpop.f32.mrf.mxu0
    %292 = vdwg.mxu0
    %293 = vst [vmem:[#allocation11] sm:$0xff] %v290
    // Predicated region
    $region42: #{tpu_custom_call.1} parent=1 // pred_check
      _
    $region43: #{tpu_custom_call.1} parent=1 // pred_check_branch
      %295 = sbr.rel (0) target = $region45
    $region44: #{tpu_custom_call.1} parent=1 // pred_region
      %297 = vsyncadd [#allocation4], 0
      %s299 = sshll.u32 [#allocation11], 4
      %s300 = int_to_ptr.vmem [resolvable:$true] %s299
      %s301 = sshll.u32 %s5, 4
      %s302 = int_to_ptr.hbm [resolvable:$true] %s301
      %304 = dma.vmem_to_hbm [thread:$0]  %s300, 128, %s302, [#allocation4]
    $region45: #{tpu_custom_call.1} parent=1 // pred_fallthru
      _
    // Predicated region
    $region46: #{tpu_custom_call.1} parent=1 // pred_check
      _
    $region47: #{tpu_custom_call.1} parent=1 // pred_check_branch
      %306 = sbr.rel (0) target = $region49
    $region48: #{tpu_custom_call.1} parent=1 // pred_region
      %308 = dma.done [#allocation4], 128
    $region49: #{tpu_custom_call.1} parent=1 // pred_fallthru
      _
    %309 = vsyncpa [#allocation3], 1
    %310 = vsyncpa [#allocation6], 1
    %311 = vsyncpa [#allocation9], 1
    %312 = vsyncpa [#allocation4], 1

</llo_original>
